<compile_context>
chip_gen: v7x
topology: tpu7x:2x2x1
jax: 0.10.0
libtpu: 0.0.40
codegen_flags: <defaults>
</compile_context>

<pallas_src>
import functools

import jax
import jax.numpy as jnp
from jax import lax
from jax.experimental import pallas as pl
from jax.experimental.pallas import tpu as pltpu


def _round_up(v, m):
    return (v + m - 1) // m * m


# ------------------------------- Pallas kernel -------------------------------

def _decoder_kernel(seed_ref, x_ref, w1_ref, b1_ref, w2_ref, b2_ref, o_ref,
                    acc_ref, *, sc, nb, cmid, n_pad, dropout_p, apply_dropout):
    """One grid step: batch tile i ("parallel") x spatial chunk j ("arbitrary").

    x_ref  : (SC, NB, C)       bf16  pooled activation slice, s-major
    w1_ref : (C, Cmid)         bf16  1x1-conv weight
    b1_ref : (1, Cmid)         f32   conv bias
    w2_ref : (SC, Cmid, OUTP)  bf16  fc-weight slice for this spatial chunk
    b2_ref : (1, OUTP)         f32   fc bias (padded to 128 lanes)
    o_ref  : (NB, OUTP)        f32   output block (written on last chunk only)
    acc_ref: (NB, OUTP)        f32   VMEM accumulator across spatial chunks
    """
    i = pl.program_id(0)          # batch tile   (parallel)
    j = pl.program_id(1)          # spatial chunk (reduction)

    @pl.when(j == 0)
    def _init():
        acc_ref[...] = jnp.zeros_like(acc_ref)

    w1 = w1_ref[...]
    b1 = b1_ref[...]

    if apply_dropout:
        seed = seed_ref[0]
        thresh = jnp.int32(int(round(dropout_p * float(1 << 24))))
        row_g = lax.broadcasted_iota(jnp.int32, (nb, cmid), 0) + i * nb
        col_g = lax.broadcasted_iota(jnp.int32, (nb, cmid), 1)

    acc_part = None
    for t in range(sc):                               # static unroll over chunk
        # conv1x1 (+bias) on this spatial position: (NB, C) @ (C, Cmid)
        y = jnp.dot(x_ref[t], w1, preferred_element_type=jnp.float32) + b1

        if apply_dropout:
            # Stateless Bernoulli(p) keep mask: hash of (seed, global s/n/c')
            # index using plain int32 VPU ops (interpret-mode safe; no mask
            # reuse across grid blocks).  1/(1-p) scale is folded into w2.
            # TODO(synk): torch.nn.Dropout's exact RNG stream is not reproduced.
            s_g = j * sc + t
            h = (s_g * n_pad + row_g) * cmid + col_g
            h = h ^ (seed * jnp.int32(1013904223))
            h = h ^ lax.shift_right_logical(h, 16)
            h = h * jnp.int32(0x7FEB352D)
            h = h ^ lax.shift_right_logical(h, 15)
            h = h * jnp.int32(0x465667B1)
            h = h ^ lax.shift_right_logical(h, 16)
            keep = (h & jnp.int32(0x00FFFFFF)) >= thresh
            y = jnp.where(keep, y, 0.0)

        # Flatten+Linear contribution of this spatial position:
        # (NB, Cmid) @ (Cmid, OUTP), accumulated over s.
        contrib = jnp.dot(y.astype(jnp.bfloat16), w2_ref[t],
                          preferred_element_type=jnp.float32)
        acc_part = contrib if acc_part is None else acc_part + contrib

    acc_ref[...] += acc_part

    @pl.when(j == pl.num_programs(1) - 1)
    def _finalize():
        o_ref[...] = jnp.maximum(acc_ref[...] + b2_ref[...], 0.0)


# --------------------------- One-time prep + wrapper --------------------------

def make_resnet_decoder(params, *, use_dropout=True, dropout_rate=0.2,
                        training=True, batch_tile=None, s_chunk=None):
    """One-time parameter packing + a jitted forward(x_nchw, seed) closure."""
    cmid, c_in = params['w_conv'].shape
    out_f, fc_in = params['w_fc'].shape
    assert fc_in % cmid == 0, "fc in_features must be Cmid * pooled_spatial"
    S = fc_in // cmid
    out_pad = _round_up(out_f, 128)
    apply_dropout = bool(use_dropout and training and dropout_rate > 0.0)

    # --- hoisted weight packing (runs once, not per forward call) ------------
    w1 = jnp.asarray(params['w_conv'].T, jnp.bfloat16)                # (C, Cmid)
    b1 = params['b_conv'].reshape(1, cmid).astype(jnp.float32)

    # fc weight: torch flatten order (c*S + s) -> (s, c, o), pad outputs to a
    # lane-dense 128; fold the dropout keep-scale in when training.
    w2 = params['w_fc'].reshape(out_f, cmid, S).transpose(2, 1, 0)    # (S,Cmid,out_f)
    w2 = jnp.pad(w2, ((0, 0), (0, 0), (0, out_pad - out_f)))
    if apply_dropout:
        w2 = w2 / (1.0 - float(dropout_rate))
    w2 = w2.astype(jnp.bfloat16)
    b2 = jnp.pad(params['b_fc'], (0, out_pad - out_f)).reshape(1, out_pad)
    b2 = b2.astype(jnp.float32)

    sc = s_chunk or next(d for d in (8, 4, 2, 1) if S % d == 0)

    @jax.jit
    def forward(x_nchw, seed):
        N, C, H, W = x_nchw.shape
        assert C == c_in and H % 2 == 0 and W % 2 == 0
        hp, wp = H // 2, W // 2
        assert hp * wp == S, "flatten_correction mismatch with input spatial dims"
        nb = batch_tile or min(_round_up(N, 8), 256)   # MXU M tile, mult. of 8
        n_pad = _round_up(N, nb)

        # AvgPool2d(2,2) as a cheap XLA reduce in the wrapper (review fix 3a):
        # the channels-last relayout below then touches 4x less data.
        # TODO(synk): an in-kernel tap gather via strided DMA could fold the
        # pool into the kernel as well; not needed at these shapes.
        xp = x_nchw.reshape(N, C, hp, 2, wp, 2).mean(axis=(3, 5))     # (N,C,hp,wp)
        xr = xp.transpose(2, 3, 0, 1).reshape(S, N, C)                # (S,N,C)
        xr = jnp.pad(xr, ((0, 0), (0, n_pad - N), (0, 0))).astype(jnp.bfloat16)

        seed_arr = jnp.asarray(seed, jnp.int32).reshape(1)

        kernel = functools.partial(
            _decoder_kernel, sc=sc, nb=nb, cmid=cmid, n_pad=n_pad,
            dropout_p=float(dropout_rate), apply_dropout=apply_dropout)

        grid = (n_pad // nb, S // sc)
        cost = pl.CostEstimate(
            flops=2 * n_pad * S * C * cmid + 2 * n_pad * S * cmid * out_pad,
            transcendentals=0,
            bytes_accessed=(xr.size + w1.size + w2.size) * 2
                           + (b1.size + b2.size + n_pad * out_pad) * 4,
        )

        out = pl.pallas_call(
            kernel,
            out_shape=jax.ShapeDtypeStruct((n_pad, out_pad), jnp.float32),
            grid_spec=pltpu.PrefetchScalarGridSpec(
                num_scalar_prefetch=1,          # dropout seed -> SMEM
                grid=grid,
                in_specs=[
                    pl.BlockSpec((sc, nb, C), lambda i, j, s_ref: (j, i, 0)),
                    pl.BlockSpec((C, cmid), lambda i, j, s_ref: (0, 0)),
                    pl.BlockSpec((1, cmid), lambda i, j, s_ref: (0, 0)),
                    pl.BlockSpec((sc, cmid, out_pad),
                                 lambda i, j, s_ref: (j, 0, 0)),
                    pl.BlockSpec((1, out_pad), lambda i, j, s_ref: (0, 0)),
                ],
                out_specs=pl.BlockSpec((nb, out_pad), lambda i, j, s_ref: (i, 0)),
                scratch_shapes=[pltpu.VMEM((nb, out_pad), jnp.float32)],
            ),
            compiler_params=pltpu.CompilerParams(
                dimension_semantics=("parallel", "arbitrary"),
                vmem_limit_bytes=32 * 1024 * 1024,
            ),
            cost_estimate=cost,
        )(seed_arr, xr, w1, b1, w2, b2)
        return out[:N, :out_f]

    return forward


# ---------------------------- Reference & params ------------------------------

def _decoder_reference(x_nchw, params):
    """Pure-JAX reference (eval-mode Dropout = identity)."""
    N, C, H, W = x_nchw.shape
    xp = x_nchw.reshape(N, C, H // 2, 2, W // 2, 2).mean(axis=(3, 5))  # AvgPool2d
    y = jnp.einsum('nchw,oc->nohw', xp, params['w_conv'])
    y = y + params['b_conv'][None, :, None, None]                      # conv bias
    z = y.reshape(N, -1) @ params['w_fc'].T + params['b_fc']           # Flatten+fc
    return jnp.maximum(z, 0.0)                                         # ReLU


def init_decoder_params(key, in_features, out_features, *, expansion=1,
                        flatten_correction=1):
    """Parameter shapes matching ResnetDecoder(in_features, out_features, ...)."""
    cmid = int(in_features * expansion)
    fc_in = int(in_features * expansion * flatten_correction)
    k1, k2, k3, k4 = jax.random.split(key, 4)
    return {
        'w_conv': jax.random.normal(k1, (cmid, in_features), jnp.float32)
                  / jnp.sqrt(float(in_features)),
        'b_conv': 0.1 * jax.random.normal(k2, (cmid,), jnp.float32),
        'w_fc':   jax.random.normal(k3, (out_features, fc_in), jnp.float32)
                  / jnp.sqrt(float(fc_in)),
        'b_fc':   0.1 * jax.random.normal(k4, (out_features,), jnp.float32),
    }


# ------------------------------------ Main ------------------------------------

if __name__ == "__main__":
    key = jax.random.PRNGKey(0)
    kx, kp = jax.random.split(key)

    # ResnetDecoder(in_features=4, out_features=32, use_dropout=True,
    #               dropout_rate=0.2, expansion=1, flatten_correction=64)
    N, C, H, W = 2, 4, 16, 16
    out_features = 32
    flatten_correction = (H // 2) * (W // 2)

    x = jax.random.normal(kx, (N, C, H, W), jnp.float32)
    params = init_decoder_params(kp, C, out_features, expansion=1,
                                 flatten_correction=flatten_correction)
    seed = jnp.int32(1234)

    fwd_eval = make_resnet_decoder(params, use_dropout=True, dropout_rate=0.2,
                                   training=False)
    fwd_train = make_resnet_decoder(params, use_dropout=True, dropout_rate=0.2,
                                    training=True)

    # 1) eval mode (Dropout = identity): check against pure JAX (tolerance
    #    covers bf16 MXU inputs; accumulation is f32).
    out_eval = jax.block_until_ready(fwd_eval(x, seed))
    ref = _decoder_reference(x, params)
    assert out_eval.shape == (N, out_features), out_eval.shape
    assert jnp.allclose(out_eval, ref, rtol=2e-2, atol=2e-2), \
        float(jnp.max(jnp.abs(out_eval - ref)))

    # 2) training mode (nn.Module default): hash-based in-kernel dropout.
    out_train = jax.block_until_ready(fwd_train(x, seed))
    assert out_train.shape == (N, out_features), out_train.shape
    assert bool(jnp.all(jnp.isfinite(out_train)))
    assert not bool(jnp.allclose(out_train, out_eval, rtol=1e-4, atol=1e-4))

    print("KERNEL_OK")
</pallas_src>

<mosaic_0001>
module attributes {stable_mosaic.version = 11 : i64} {
  func.func @_decoder_kernel(%arg0: i32, %arg1: i32, %arg2: memref<1xi32, #tpu.memory_space<smem>>, %arg3: memref<8x8x4xbf16, #tpu.memory_space<vmem>>, %arg4: memref<4x4xbf16, #tpu.memory_space<vmem>>, %arg5: memref<1x4xf32, #tpu.memory_space<vmem>>, %arg6: memref<8x4x128xbf16, #tpu.memory_space<vmem>>, %arg7: memref<1x128xf32, #tpu.memory_space<vmem>>, %arg8: memref<8x128xf32, #tpu.memory_space<vmem>>, %arg9: memref<8x128xf32, #tpu.memory_space<vmem>>) attributes {dimension_semantics = [#tpu.dimension_semantics<parallel>, #tpu.dimension_semantics<arbitrary>], iteration_bounds = array<i64: 1, 8>, scalar_prefetch = 1 : i64, scratch_operands = 1 : i64, tpu.core_type = #tpu.core_type<tc>, window_params = [{transform_indices = @transform_0, window_bounds = array<i64: 8, 8, 4>}, {pipeline_mode = #tpu.pipeline_mode<synchronous>, transform_indices = @transform_1, window_bounds = array<i64: 4, 4>}, {pipeline_mode = #tpu.pipeline_mode<synchronous>, transform_indices = @transform_2, window_bounds = array<i64: 1, 4>}, {transform_indices = @transform_3, window_bounds = array<i64: 8, 4, 128>}, {pipeline_mode = #tpu.pipeline_mode<synchronous>, transform_indices = @transform_4, window_bounds = array<i64: 1, 128>}, {transform_indices = @transform_5, window_bounds = array<i64: 8, 128>}]} {
    %c0_i32 = arith.constant 0 : i32
    %0 = arith.cmpi eq, %arg1, %c0_i32 : i32
    %1 = arith.extui %0 : i1 to i32
    %c0_i32_0 = arith.constant 0 : i32
    %2 = arith.cmpi ne, %1, %c0_i32_0 : i32
    scf.if %2 {
      %cst_65 = arith.constant 0.000000e+00 : f32
      %90 = vector.broadcast %cst_65 : f32 to vector<8x128xf32>
      %c0_66 = arith.constant 0 : index
      %c0_67 = arith.constant 0 : index
      %91 = vector.load %arg9[%c0_66, %c0_67] : memref<8x128xf32, #tpu.memory_space<vmem>>, vector<8x128xf32>
      tpu.vector_store %arg9[%c0_66, %c0_67], %90 {strides = array<i32>} : memref<8x128xf32, #tpu.memory_space<vmem>>, vector<8x128xf32>,
    } else {
    }
    %c0 = arith.constant 0 : index
    %c0_1 = arith.constant 0 : index
    %3 = vector.load %arg4[%c0, %c0_1] : memref<4x4xbf16, #tpu.memory_space<vmem>>, vector<4x4xbf16>
    %c0_2 = arith.constant 0 : index
    %c0_3 = arith.constant 0 : index
    %4 = vector.load %arg5[%c0_2, %c0_3] : memref<1x4xf32, #tpu.memory_space<vmem>>, vector<1x4xf32>
    %c0_4 = arith.constant 0 : index
    %c0_5 = arith.constant 0 : index
    %c0_6 = arith.constant 0 : index
    %5 = vector.load %arg3[%c0_4, %c0_5, %c0_6] : memref<8x8x4xbf16, #tpu.memory_space<vmem>>, vector<1x8x4xbf16>
    %6 = vector.shape_cast %5 : vector<1x8x4xbf16> to vector<8x4xbf16>
    %cst = arith.constant dense<0.000000e+00> : vector<8x4xf32>
    %7 = tpu.matmul %6, %3, %cst {dimension_numbers = #tpu.dot_dimension_numbers<[1], [0], [0], [1], [0, 0, 1, 1], [], []>} : vector<8x4xbf16>, vector<4x4xbf16>, vector<8x4xf32> -> vector<8x4xf32>
    %8 = vector.broadcast %4 : vector<1x4xf32> to vector<8x4xf32>
    %9 = arith.addf %7, %8 : vector<8x4xf32>
    %10 = arith.truncf %9 : vector<8x4xf32> to vector<8x4xbf16>
    %c0_7 = arith.constant 0 : index
    %c0_8 = arith.constant 0 : index
    %c0_9 = arith.constant 0 : index
    %11 = vector.load %arg6[%c0_7, %c0_8, %c0_9] : memref<8x4x128xbf16, #tpu.memory_space<vmem>>, vector<1x4x128xbf16>
    %12 = vector.shape_cast %11 : vector<1x4x128xbf16> to vector<4x128xbf16>
    %cst_10 = arith.constant dense<0.000000e+00> : vector<8x128xf32>
    %13 = tpu.matmul %10, %12, %cst_10 {dimension_numbers = #tpu.dot_dimension_numbers<[1], [0], [0], [1], [0, 0, 1, 1], [], []>} : vector<8x4xbf16>, vector<4x128xbf16>, vector<8x128xf32> -> vector<8x128xf32>
    %c1 = arith.constant 1 : index
    %c0_11 = arith.constant 0 : index
    %c0_12 = arith.constant 0 : index
    %14 = vector.load %arg3[%c1, %c0_11, %c0_12] : memref<8x8x4xbf16, #tpu.memory_space<vmem>>, vector<1x8x4xbf16>
    %15 = vector.shape_cast %14 : vector<1x8x4xbf16> to vector<8x4xbf16>
    %cst_13 = arith.constant dense<0.000000e+00> : vector<8x4xf32>
    %16 = tpu.matmul %15, %3, %cst_13 {dimension_numbers = #tpu.dot_dimension_numbers<[1], [0], [0], [1], [0, 0, 1, 1], [], []>} : vector<8x4xbf16>, vector<4x4xbf16>, vector<8x4xf32> -> vector<8x4xf32>
    %17 = vector.broadcast %4 : vector<1x4xf32> to vector<8x4xf32>
    %18 = arith.addf %16, %17 : vector<8x4xf32>
    %19 = arith.truncf %18 : vector<8x4xf32> to vector<8x4xbf16>
    %c1_14 = arith.constant 1 : index
    %c0_15 = arith.constant 0 : index
    %c0_16 = arith.constant 0 : index
    %20 = vector.load %arg6[%c1_14, %c0_15, %c0_16] : memref<8x4x128xbf16, #tpu.memory_space<vmem>>, vector<1x4x128xbf16>
    %21 = vector.shape_cast %20 : vector<1x4x128xbf16> to vector<4x128xbf16>
    %cst_17 = arith.constant dense<0.000000e+00> : vector<8x128xf32>
    %22 = tpu.matmul %19, %21, %cst_17 {dimension_numbers = #tpu.dot_dimension_numbers<[1], [0], [0], [1], [0, 0, 1, 1], [], []>} : vector<8x4xbf16>, vector<4x128xbf16>, vector<8x128xf32> -> vector<8x128xf32>
    %23 = arith.addf %13, %22 : vector<8x128xf32>
    %c2 = arith.constant 2 : index
    %c0_18 = arith.constant 0 : index
    %c0_19 = arith.constant 0 : index
    %24 = vector.load %arg3[%c2, %c0_18, %c0_19] : memref<8x8x4xbf16, #tpu.memory_space<vmem>>, vector<1x8x4xbf16>
    %25 = vector.shape_cast %24 : vector<1x8x4xbf16> to vector<8x4xbf16>
    %cst_20 = arith.constant dense<0.000000e+00> : vector<8x4xf32>
    %26 = tpu.matmul %25, %3, %cst_20 {dimension_numbers = #tpu.dot_dimension_numbers<[1], [0], [0], [1], [0, 0, 1, 1], [], []>} : vector<8x4xbf16>, vector<4x4xbf16>, vector<8x4xf32> -> vector<8x4xf32>
    %27 = vector.broadcast %4 : vector<1x4xf32> to vector<8x4xf32>
    %28 = arith.addf %26, %27 : vector<8x4xf32>
    %29 = arith.truncf %28 : vector<8x4xf32> to vector<8x4xbf16>
    %c2_21 = arith.constant 2 : index
    %c0_22 = arith.constant 0 : index
    %c0_23 = arith.constant 0 : index
    %30 = vector.load %arg6[%c2_21, %c0_22, %c0_23] : memref<8x4x128xbf16, #tpu.memory_space<vmem>>, vector<1x4x128xbf16>
    %31 = vector.shape_cast %30 : vector<1x4x128xbf16> to vector<4x128xbf16>
    %cst_24 = arith.constant dense<0.000000e+00> : vector<8x128xf32>
    %32 = tpu.matmul %29, %31, %cst_24 {dimension_numbers = #tpu.dot_dimension_numbers<[1], [0], [0], [1], [0, 0, 1, 1], [], []>} : vector<8x4xbf16>, vector<4x128xbf16>, vector<8x128xf32> -> vector<8x128xf32>
    %33 = arith.addf %23, %32 : vector<8x128xf32>
    %c3 = arith.constant 3 : index
    %c0_25 = arith.constant 0 : index
    %c0_26 = arith.constant 0 : index
    %34 = vector.load %arg3[%c3, %c0_25, %c0_26] : memref<8x8x4xbf16, #tpu.memory_space<vmem>>, vector<1x8x4xbf16>
    %35 = vector.shape_cast %34 : vector<1x8x4xbf16> to vector<8x4xbf16>
    %cst_27 = arith.constant dense<0.000000e+00> : vector<8x4xf32>
    %36 = tpu.matmul %35, %3, %cst_27 {dimension_numbers = #tpu.dot_dimension_numbers<[1], [0], [0], [1], [0, 0, 1, 1], [], []>} : vector<8x4xbf16>, vector<4x4xbf16>, vector<8x4xf32> -> vector<8x4xf32>
    %37 = vector.broadcast %4 : vector<1x4xf32> to vector<8x4xf32>
    %38 = arith.addf %36, %37 : vector<8x4xf32>
    %39 = arith.truncf %38 : vector<8x4xf32> to vector<8x4xbf16>
    %c3_28 = arith.constant 3 : index
    %c0_29 = arith.constant 0 : index
    %c0_30 = arith.constant 0 : index
    %40 = vector.load %arg6[%c3_28, %c0_29, %c0_30] : memref<8x4x128xbf16, #tpu.memory_space<vmem>>, vector<1x4x128xbf16>
    %41 = vector.shape_cast %40 : vector<1x4x128xbf16> to vector<4x128xbf16>
    %cst_31 = arith.constant dense<0.000000e+00> : vector<8x128xf32>
    %42 = tpu.matmul %39, %41, %cst_31 {dimension_numbers = #tpu.dot_dimension_numbers<[1], [0], [0], [1], [0, 0, 1, 1], [], []>} : vector<8x4xbf16>, vector<4x128xbf16>, vector<8x128xf32> -> vector<8x128xf32>
    %43 = arith.addf %33, %42 : vector<8x128xf32>
    %c4 = arith.constant 4 : index
    %c0_32 = arith.constant 0 : index
    %c0_33 = arith.constant 0 : index
    %44 = vector.load %arg3[%c4, %c0_32, %c0_33] : memref<8x8x4xbf16, #tpu.memory_space<vmem>>, vector<1x8x4xbf16>
    %45 = vector.shape_cast %44 : vector<1x8x4xbf16> to vector<8x4xbf16>
    %cst_34 = arith.constant dense<0.000000e+00> : vector<8x4xf32>
    %46 = tpu.matmul %45, %3, %cst_34 {dimension_numbers = #tpu.dot_dimension_numbers<[1], [0], [0], [1], [0, 0, 1, 1], [], []>} : vector<8x4xbf16>, vector<4x4xbf16>, vector<8x4xf32> -> vector<8x4xf32>
    %47 = vector.broadcast %4 : vector<1x4xf32> to vector<8x4xf32>
    %48 = arith.addf %46, %47 : vector<8x4xf32>
    %49 = arith.truncf %48 : vector<8x4xf32> to vector<8x4xbf16>
    %c4_35 = arith.constant 4 : index
    %c0_36 = arith.constant 0 : index
    %c0_37 = arith.constant 0 : index
    %50 = vector.load %arg6[%c4_35, %c0_36, %c0_37] : memref<8x4x128xbf16, #tpu.memory_space<vmem>>, vector<1x4x128xbf16>
    %51 = vector.shape_cast %50 : vector<1x4x128xbf16> to vector<4x128xbf16>
    %cst_38 = arith.constant dense<0.000000e+00> : vector<8x128xf32>
    %52 = tpu.matmul %49, %51, %cst_38 {dimension_numbers = #tpu.dot_dimension_numbers<[1], [0], [0], [1], [0, 0, 1, 1], [], []>} : vector<8x4xbf16>, vector<4x128xbf16>, vector<8x128xf32> -> vector<8x128xf32>
    %53 = arith.addf %43, %52 : vector<8x128xf32>
    %c5 = arith.constant 5 : index
    %c0_39 = arith.constant 0 : index
    %c0_40 = arith.constant 0 : index
    %54 = vector.load %arg3[%c5, %c0_39, %c0_40] : memref<8x8x4xbf16, #tpu.memory_space<vmem>>, vector<1x8x4xbf16>
    %55 = vector.shape_cast %54 : vector<1x8x4xbf16> to vector<8x4xbf16>
    %cst_41 = arith.constant dense<0.000000e+00> : vector<8x4xf32>
    %56 = tpu.matmul %55, %3, %cst_41 {dimension_numbers = #tpu.dot_dimension_numbers<[1], [0], [0], [1], [0, 0, 1, 1], [], []>} : vector<8x4xbf16>, vector<4x4xbf16>, vector<8x4xf32> -> vector<8x4xf32>
    %57 = vector.broadcast %4 : vector<1x4xf32> to vector<8x4xf32>
    %58 = arith.addf %56, %57 : vector<8x4xf32>
    %59 = arith.truncf %58 : vector<8x4xf32> to vector<8x4xbf16>
    %c5_42 = arith.constant 5 : index
    %c0_43 = arith.constant 0 : index
    %c0_44 = arith.constant 0 : index
    %60 = vector.load %arg6[%c5_42, %c0_43, %c0_44] : memref<8x4x128xbf16, #tpu.memory_space<vmem>>, vector<1x4x128xbf16>
    %61 = vector.shape_cast %60 : vector<1x4x128xbf16> to vector<4x128xbf16>
    %cst_45 = arith.constant dense<0.000000e+00> : vector<8x128xf32>
    %62 = tpu.matmul %59, %61, %cst_45 {dimension_numbers = #tpu.dot_dimension_numbers<[1], [0], [0], [1], [0, 0, 1, 1], [], []>} : vector<8x4xbf16>, vector<4x128xbf16>, vector<8x128xf32> -> vector<8x128xf32>
    %63 = arith.addf %53, %62 : vector<8x128xf32>
    %c6 = arith.constant 6 : index
    %c0_46 = arith.constant 0 : index
    %c0_47 = arith.constant 0 : index
    %64 = vector.load %arg3[%c6, %c0_46, %c0_47] : memref<8x8x4xbf16, #tpu.memory_space<vmem>>, vector<1x8x4xbf16>
    %65 = vector.shape_cast %64 : vector<1x8x4xbf16> to vector<8x4xbf16>
    %cst_48 = arith.constant dense<0.000000e+00> : vector<8x4xf32>
    %66 = tpu.matmul %65, %3, %cst_48 {dimension_numbers = #tpu.dot_dimension_numbers<[1], [0], [0], [1], [0, 0, 1, 1], [], []>} : vector<8x4xbf16>, vector<4x4xbf16>, vector<8x4xf32> -> vector<8x4xf32>
    %67 = vector.broadcast %4 : vector<1x4xf32> to vector<8x4xf32>
    %68 = arith.addf %66, %67 : vector<8x4xf32>
    %69 = arith.truncf %68 : vector<8x4xf32> to vector<8x4xbf16>
    %c6_49 = arith.constant 6 : index
    %c0_50 = arith.constant 0 : index
    %c0_51 = arith.constant 0 : index
    %70 = vector.load %arg6[%c6_49, %c0_50, %c0_51] : memref<8x4x128xbf16, #tpu.memory_space<vmem>>, vector<1x4x128xbf16>
    %71 = vector.shape_cast %70 : vector<1x4x128xbf16> to vector<4x128xbf16>
    %cst_52 = arith.constant dense<0.000000e+00> : vector<8x128xf32>
    %72 = tpu.matmul %69, %71, %cst_52 {dimension_numbers = #tpu.dot_dimension_numbers<[1], [0], [0], [1], [0, 0, 1, 1], [], []>} : vector<8x4xbf16>, vector<4x128xbf16>, vector<8x128xf32> -> vector<8x128xf32>
    %73 = arith.addf %63, %72 : vector<8x128xf32>
    %c7 = arith.constant 7 : index
    %c0_53 = arith.constant 0 : index
    %c0_54 = arith.constant 0 : index
    %74 = vector.load %arg3[%c7, %c0_53, %c0_54] : memref<8x8x4xbf16, #tpu.memory_space<vmem>>, vector<1x8x4xbf16>
    %75 = vector.shape_cast %74 : vector<1x8x4xbf16> to vector<8x4xbf16>
    %cst_55 = arith.constant dense<0.000000e+00> : vector<8x4xf32>
    %76 = tpu.matmul %75, %3, %cst_55 {dimension_numbers = #tpu.dot_dimension_numbers<[1], [0], [0], [1], [0, 0, 1, 1], [], []>} : vector<8x4xbf16>, vector<4x4xbf16>, vector<8x4xf32> -> vector<8x4xf32>
    %77 = vector.broadcast %4 : vector<1x4xf32> to vector<8x4xf32>
    %78 = arith.addf %76, %77 : vector<8x4xf32>
    %79 = arith.truncf %78 : vector<8x4xf32> to vector<8x4xbf16>
    %c7_56 = arith.constant 7 : index
    %c0_57 = arith.constant 0 : index
    %c0_58 = arith.constant 0 : index
    %80 = vector.load %arg6[%c7_56, %c0_57, %c0_58] : memref<8x4x128xbf16, #tpu.memory_space<vmem>>, vector<1x4x128xbf16>
    %81 = vector.shape_cast %80 : vector<1x4x128xbf16> to vector<4x128xbf16>
    %cst_59 = arith.constant dense<0.000000e+00> : vector<8x128xf32>
    %82 = tpu.matmul %79, %81, %cst_59 {dimension_numbers = #tpu.dot_dimension_numbers<[1], [0], [0], [1], [0, 0, 1, 1], [], []>} : vector<8x4xbf16>, vector<4x128xbf16>, vector<8x128xf32> -> vector<8x128xf32>
    %83 = arith.addf %73, %82 : vector<8x128xf32>
    %c0_60 = arith.constant 0 : index
    %c0_61 = arith.constant 0 : index
    %84 = vector.load %arg9[%c0_60, %c0_61] : memref<8x128xf32, #tpu.memory_space<vmem>>, vector<8x128xf32>
    %85 = arith.addf %84, %83 : vector<8x128xf32>
    %c0_62 = arith.constant 0 : index
    %c0_63 = arith.constant 0 : index
    %86 = vector.load %arg9[%c0_62, %c0_63] : memref<8x128xf32, #tpu.memory_space<vmem>>, vector<8x128xf32>
    tpu.vector_store %arg9[%c0_62, %c0_63], %85 {strides = array<i32>} : memref<8x128xf32, #tpu.memory_space<vmem>>, vector<8x128xf32>,
    %c7_i32 = arith.constant 7 : i32
    %87 = arith.cmpi eq, %arg1, %c7_i32 : i32
    %88 = arith.extui %87 : i1 to i32
    %c0_i32_64 = arith.constant 0 : i32
    %89 = arith.cmpi ne, %88, %c0_i32_64 : i32
    scf.if %89 {
      %c0_65 = arith.constant 0 : index
      %c0_66 = arith.constant 0 : index
      %90 = vector.load %arg9[%c0_65, %c0_66] : memref<8x128xf32, #tpu.memory_space<vmem>>, vector<8x128xf32>
      %c0_67 = arith.constant 0 : index
      %c0_68 = arith.constant 0 : index
      %91 = vector.load %arg7[%c0_67, %c0_68] : memref<1x128xf32, #tpu.memory_space<vmem>>, vector<1x128xf32>
      %92 = vector.broadcast %91 : vector<1x128xf32> to vector<8x128xf32>
      %93 = arith.addf %90, %92 : vector<8x128xf32>
      %cst_69 = arith.constant 0.000000e+00 : f32
      %94 = vector.broadcast %cst_69 : f32 to vector<8x128xf32>
      %95 = arith.maximumf %93, %94 : vector<8x128xf32>
      %c0_70 = arith.constant 0 : index
      %c0_71 = arith.constant 0 : index
      %96 = vector.load %arg8[%c0_70, %c0_71] : memref<8x128xf32, #tpu.memory_space<vmem>>, vector<8x128xf32>
      tpu.vector_store %arg8[%c0_70, %c0_71], %95 {strides = array<i32>} : memref<8x128xf32, #tpu.memory_space<vmem>>, vector<8x128xf32>,
    } else {
    }
    return
  }
  func.func @transform_0(%arg0: i32, %arg1: i32, %arg2: memref<1xi32, #tpu.memory_space<smem>>) -> (i32, i32, i32) {
    %c0_i32 = arith.constant 0 : i32
    %c0_i32_0 = arith.constant 0 : i32
    return %arg1, %arg0, %c0_i32 : i32, i32, i32
  }
  func.func @transform_1(%arg0: i32, %arg1: i32, %arg2: memref<1xi32, #tpu.memory_space<smem>>) -> (i32, i32) {
    %c0_i32 = arith.constant 0 : i32
    %c0_i32_0 = arith.constant 0 : i32
    %c0_i32_1 = arith.constant 0 : i32
    return %c0_i32, %c0_i32_0 : i32, i32
  }
  func.func @transform_2(%arg0: i32, %arg1: i32, %arg2: memref<1xi32, #tpu.memory_space<smem>>) -> (i32, i32) {
    %c0_i32 = arith.constant 0 : i32
    %c0_i32_0 = arith.constant 0 : i32
    %c0_i32_1 = arith.constant 0 : i32
    return %c0_i32, %c0_i32_0 : i32, i32
  }
  func.func @transform_3(%arg0: i32, %arg1: i32, %arg2: memref<1xi32, #tpu.memory_space<smem>>) -> (i32, i32, i32) {
    %c0_i32 = arith.constant 0 : i32
    %c0_i32_0 = arith.constant 0 : i32
    %c0_i32_1 = arith.constant 0 : i32
    return %arg1, %c0_i32, %c0_i32_0 : i32, i32, i32
  }
  func.func @transform_4(%arg0: i32, %arg1: i32, %arg2: memref<1xi32, #tpu.memory_space<smem>>) -> (i32, i32) {
    %c0_i32 = arith.constant 0 : i32
    %c0_i32_0 = arith.constant 0 : i32
    %c0_i32_1 = arith.constant 0 : i32
    return %c0_i32, %c0_i32_0 : i32, i32
  }
  func.func @transform_5(%arg0: i32, %arg1: i32, %arg2: memref<1xi32, #tpu.memory_space<smem>>) -> (i32, i32) {
    %c0_i32 = arith.constant 0 : i32
    %c0_i32_0 = arith.constant 0 : i32
    return %arg0, %c0_i32 : i32, i32
  }
}

</mosaic_0001>

<llo_original>
// kernel: forward.1
$region0: #{forward.1}
  #allocation0 [shape = 'u32[]', space=smem, size = 0x4, offset = 0x4, fixed_abs, tag = 'smem constant byte address 0x4 - core index']
  #allocation1 [shape = 'u32[144,128]{1,0:T(1,128)}', space=vmem, size = 0x12000, scoped, tag = 'internal scratch']
  #allocation2 [shape = 'f32[8,128]{1,0:T(8,128)}', space=vmem, size = 0x1000, scoped, tag = 'scratch operand']
  #allocation3 [shape = 's32[1]{0}', space=sflag, size = 0x4, scoped, tag = 'scoped memory for forward.1']
  #allocation4 [shape = 's32[1]{0:T(128)S(6)}', space=smem, size = 0x200, scoped, tag = 'prefetched SMEM operand 0']
  %s0 = inlined_call_operand.<no memory space> [shape: s32[1], index: 0, kind: input, shape index: {}]
  %s1 = inlined_call_operand.vmem [shape: bf16[64,8,4], index: 1, kind: input, shape index: {}]
  %s2 = inlined_call_operand.vmem [shape: bf16[4,4], index: 2, kind: input, shape index: {}]
  %s3 = inlined_call_operand.vmem [shape: f32[1,4], index: 3, kind: input, shape index: {}]
  %s4 = inlined_call_operand.vmem [shape: bf16[64,4,128], index: 4, kind: input, shape index: {}]
  %s5 = inlined_call_operand.vmem [shape: f32[1,128], index: 5, kind: input, shape index: {}]
  %s6 = inlined_call_operand.vmem [shape: f32[8,128], index: 6, kind: output, shape index: {}]
  %s7 = sld [smem:[#allocation0]]
  $region61: #{forward.1} parent=0
    _
  %s9 = ssub.s32 1, %s7
  %s10 = scalar_select 0, %s9, %s7
  %11 = sst [smem:[#allocation4]] %s0
  loop: start=0, step=1, limit=10
  $region2: #{forward.1} parent=0 // loop_pre_header
    _
  $region3: #{forward.1} parent=0 // loop_header
    %s13 = sphi 0, %s17
    %p14 = scmp.ge.s32.totalorder %s13, 10
    %s20 = sphi 0, %s32
    %s21 = sphi 0, %s28
    %s22 = sphi 0, %s20
    %s23 = sphi 0, %s21
    %s24 = sphi 0, %s22
    %s25 = sphi 0, %s23
    %s37 = sphi 0, %s39
    %s40 = sphi 0, %s37
    %s41 = sphi 0, %s40
    %s57 = sphi 0, %s41
    %s61 = sphi 0, %s61
    %s63 = sphi 0, %s61
    %s64 = sphi 0, %s63
    %s78 = sphi 0, %s64
    %s82 = sphi 0, %s82
    %s84 = sphi 0, %s82
    %s85 = sphi 0, %s84
    %s99 = sphi 0, %s85
    %s105 = sphi 0, %s107
    %s108 = sphi 0, %s105
    %s109 = sphi 0, %s108
    %s125 = sphi 0, %s109
    %s129 = sphi 0, %s129
    %s131 = sphi 0, %s129
    %s132 = sphi 0, %s131
    %s146 = sphi 0, %s132
    %s152 = sphi 0, %s154
    %s155 = sphi 0, %s152
    %s156 = sphi 0, %s155
    %s172 = sphi 0, %s156
  $region4: #{forward.1} parent=0 // loop_header_branch
    %16 = sbr.rel (%p14) target = $region8
  $region5: #{forward.1} parent=0 // loop_body
    %s18 = ssub.s32 %s13, 1
    %s19 = ssub.s32 %s13, 2
    %s26 = sadd.s32 1, %s21
    %p27 = scmp.ge.s32.totalorder %s26, 8
    %s28 = scalar_select %p27, 0, %s26
    %s29 = sadd.s32 1, %s20
    %s30 = scalar_select %p27, %s29, %s20
    %p31 = scmp.ge.s32.totalorder %s30, 1
    %s32 = scalar_select %p31, 0, %s30
    %s33 = ssub.s32 %s21, %s28
    %s34 = ssub.s32 %s20, %s32
    %s35 = sor.u32 %s33, %s34
    %p36 = scmp.eq.s32.totalorder %s35, 0
    %s38 = sadd.s32 %s37, 1
    %s39 = scalar_select %p36, %s37, %s38
    %p42 = pneg %p36
    %p43 = scmp.eq.s32.totalorder %s13, 7
    %p44 = por %p42, %p43
    %p45 = scmp.ne.s32.totalorder %s37, %s40
    %p46 = scmp.eq.s32.totalorder %s13, 0
    %p47 = por %p45, %p46
    %p48 = scmp.ne.s32.totalorder %s37, %s40
    %p49 = scmp.eq.s32.totalorder %s18, 7
    %p50 = por %p48, %p49
    %p51 = scmp.ne.s32.totalorder %s40, %s41
    %p52 = scmp.eq.s32.totalorder %s18, 0
    %p53 = por %p51, %p52
    %p54 = scmp.ne.s32.totalorder %s40, %s41
    %p55 = scmp.eq.s32.totalorder %s19, 7
    %p56 = por %p54, %p55
    %p58 = scmp.ne.s32.totalorder %s41, %s57
    %p59 = scmp.eq.s32.totalorder %s19, 0
    %p60 = por %p58, %p59
    %s62 = sadd.s32 %s61, 1
    %p65 = scmp.eq.s32.totalorder %s13, 7
    %p66 = scmp.ne.s32.totalorder %s61, %s63
    %p67 = scmp.eq.s32.totalorder %s13, 0
    %p68 = por %p66, %p67
    %p69 = scmp.ne.s32.totalorder %s61, %s63
    %p70 = scmp.eq.s32.totalorder %s18, 7
    %p71 = por %p69, %p70
    %p72 = scmp.ne.s32.totalorder %s63, %s64
    %p73 = scmp.eq.s32.totalorder %s18, 0
    %p74 = por %p72, %p73
    %p75 = scmp.ne.s32.totalorder %s63, %s64
    %p76 = scmp.eq.s32.totalorder %s19, 7
    %p77 = por %p75, %p76
    %p79 = scmp.ne.s32.totalorder %s64, %s78
    %p80 = scmp.eq.s32.totalorder %s19, 0
    %p81 = por %p79, %p80
    %s83 = sadd.s32 %s82, 1
    %p86 = scmp.eq.s32.totalorder %s13, 7
    %p87 = scmp.ne.s32.totalorder %s82, %s84
    %p88 = scmp.eq.s32.totalorder %s13, 0
    %p89 = por %p87, %p88
    %p90 = scmp.ne.s32.totalorder %s82, %s84
    %p91 = scmp.eq.s32.totalorder %s18, 7
    %p92 = por %p90, %p91
    %p93 = scmp.ne.s32.totalorder %s84, %s85
    %p94 = scmp.eq.s32.totalorder %s18, 0
    %p95 = por %p93, %p94
    %p96 = scmp.ne.s32.totalorder %s84, %s85
    %p97 = scmp.eq.s32.totalorder %s19, 7
    %p98 = por %p96, %p97
    %p100 = scmp.ne.s32.totalorder %s85, %s99
    %p101 = scmp.eq.s32.totalorder %s19, 0
    %p102 = por %p100, %p101
    %s103 = ssub.s32 %s21, %s28
    %p104 = scmp.eq.s32.totalorder %s103, 0
    %s106 = sadd.s32 %s105, 1
    %s107 = scalar_select %p104, %s105, %s106
    %p110 = pneg %p104
    %p111 = scmp.eq.s32.totalorder %s13, 7
    %p112 = por %p110, %p111
    %p113 = scmp.ne.s32.totalorder %s105, %s108
    %p114 = scmp.eq.s32.totalorder %s13, 0
    %p115 = por %p113, %p114
    %p116 = scmp.ne.s32.totalorder %s105, %s108
    %p117 = scmp.eq.s32.totalorder %s18, 7
    %p118 = por %p116, %p117
    %p119 = scmp.ne.s32.totalorder %s108, %s109
    %p120 = scmp.eq.s32.totalorder %s18, 0
    %p121 = por %p119, %p120
    %p122 = scmp.ne.s32.totalorder %s108, %s109
    %p123 = scmp.eq.s32.totalorder %s19, 7
    %p124 = por %p122, %p123
    %p126 = scmp.ne.s32.totalorder %s109, %s125
    %p127 = scmp.eq.s32.totalorder %s19, 0
    %p128 = por %p126, %p127
    %s130 = sadd.s32 %s129, 1
    %p133 = scmp.eq.s32.totalorder %s13, 7
    %p134 = scmp.ne.s32.totalorder %s129, %s131
    %p135 = scmp.eq.s32.totalorder %s13, 0
    %p136 = por %p134, %p135
    %p137 = scmp.ne.s32.totalorder %s129, %s131
    %p138 = scmp.eq.s32.totalorder %s18, 7
    %p139 = por %p137, %p138
    %p140 = scmp.ne.s32.totalorder %s131, %s132
    %p141 = scmp.eq.s32.totalorder %s18, 0
    %p142 = por %p140, %p141
    %p143 = scmp.ne.s32.totalorder %s131, %s132
    %p144 = scmp.eq.s32.totalorder %s19, 7
    %p145 = por %p143, %p144
    %p147 = scmp.ne.s32.totalorder %s132, %s146
    %p148 = scmp.eq.s32.totalorder %s19, 0
    %p149 = por %p147, %p148
    %s150 = ssub.s32 %s20, %s32
    %p151 = scmp.eq.s32.totalorder %s150, 0
    %s153 = sadd.s32 %s152, 1
    %s154 = scalar_select %p151, %s152, %s153
    %p157 = pneg %p151
    %p158 = scmp.eq.s32.totalorder %s13, 7
    %p159 = por %p157, %p158
    %p160 = scmp.ne.s32.totalorder %s152, %s155
    %p161 = scmp.eq.s32.totalorder %s13, 0
    %p162 = por %p160, %p161
    %p163 = scmp.ne.s32.totalorder %s152, %s155
    %p164 = scmp.eq.s32.totalorder %s18, 7
    %p165 = por %p163, %p164
    %p166 = scmp.ne.s32.totalorder %s155, %s156
    %p167 = scmp.eq.s32.totalorder %s18, 0
    %p168 = por %p166, %p167
    %p169 = scmp.ne.s32.totalorder %s155, %s156
    %p170 = scmp.eq.s32.totalorder %s19, 7
    %p171 = por %p169, %p170
    %p173 = scmp.ne.s32.totalorder %s156, %s172
    %p174 = scmp.eq.s32.totalorder %s19, 0
    %p175 = por %p173, %p174
    %p176 = scmp.le.s32.totalorder 1, %s13
    %p177 = scmp.lt.s32.totalorder %s13, 9
    %p178 = pnand %p176, %p177
    %p179 = pneg %p178
    // Predicated region
    $region9: #{forward.1} parent=5 // pred_check
      _
    $region10: #{forward.1} parent=5 // pred_check_branch
      %181 = sbr.rel (%p178) target = $region12
    $region11: #{forward.1} parent=5 // pred_region
      %s182 = ssub.s32 %s13, 1
      // Predicated region
      $region13: #{forward.1} parent=11 // pred_check
        %p183 = pneg %p74
      $region14: #{forward.1} parent=11 // pred_check_branch
        %185 = sbr.rel (%p183) target = $region16
      $region15: #{forward.1} parent=11 // pred_region
        _
      $region16: #{forward.1} parent=11 // pred_fallthru
        _
      // Predicated region
      $region17: #{forward.1} parent=11 // pred_check
        %p186 = pneg %p95
      $region18: #{forward.1} parent=11 // pred_check_branch
        %188 = sbr.rel (%p186) target = $region20
      $region19: #{forward.1} parent=11 // pred_region
        _
      $region20: #{forward.1} parent=11 // pred_fallthru
        _
      // Predicated region
      $region21: #{forward.1} parent=11 // pred_check
        %p189 = pneg %p142
      $region22: #{forward.1} parent=11 // pred_check_branch
        %191 = sbr.rel (%p189) target = $region24
      $region23: #{forward.1} parent=11 // pred_region
        _
      $region24: #{forward.1} parent=11 // pred_fallthru
        _
    $region12: #{forward.1} parent=5 // pred_fallthru
      _
    %p192 = scmp.lt.s32.totalorder %s13, 8
    // Predicated region
    $region25: #{forward.1} parent=5 // pred_check
      %p193 = pneg %p192
    $region26: #{forward.1} parent=5 // pred_check_branch
      %195 = sbr.rel (%p193) target = $region28
    $region27: #{forward.1} parent=5 // pred_region
      // Predicated region
      $region29: #{forward.1} parent=27 // pred_check
        %p196 = pneg %p47
      $region30: #{forward.1} parent=27 // pred_check_branch
        %198 = sbr.rel (%p196) target = $region32
      $region31: #{forward.1} parent=27 // pred_region
        %s199 = smul.u32 8, %s21
        %p200 = scmp.lt.s32.totalorder %s199, 63
        %s201 = scalar_select %p200, %s199, 63
        %p202 = scmp.lt.s32.totalorder %s20, 0
        %s203 = scalar_select %p202, %s20, 0
        %s204 = sadd.s32 %s203, %s201
        %s205 = smul.addr %s204, 4
        %s206 = scalar_lea.vmem %s1, %s205
        %s207 = smul.u32 8, %s21
      $region32: #{forward.1} parent=27 // pred_fallthru
        _
      // Predicated region
      $region33: #{forward.1} parent=27 // pred_check
        %p208 = pneg %p115
      $region34: #{forward.1} parent=27 // pred_check_branch
        %210 = sbr.rel (%p208) target = $region36
      $region35: #{forward.1} parent=27 // pred_region
        %s211 = smul.u32 8, %s21
        %p212 = scmp.lt.s32.totalorder %s211, 63
        %s213 = scalar_select %p212, %s211, 63
        %s214 = smul.addr %s213, 2
        %s215 = scalar_lea.vmem %s4, %s214
        %s216 = smul.u32 8, %s21
      $region36: #{forward.1} parent=27 // pred_fallthru
        _
    $region28: #{forward.1} parent=5 // pred_fallthru
      _
    %p217 = scmp.le.s32.totalorder 1, %s13
    %p218 = scmp.lt.s32.totalorder %s13, 9
    %p219 = pnand %p217, %p218
    %p220 = pneg %p219
    // Predicated region
    $region37: #{forward.1} parent=5 // pred_check
      _
    $region38: #{forward.1} parent=5 // pred_check_branch
      %222 = sbr.rel (%p219) target = $region40
    $region39: #{forward.1} parent=5 // pred_region
      %s223 = ssub.s32 %s13, 1
      %s224 = smul.u32 8, %s23
      %p225 = scmp.lt.s32.totalorder %s224, 63
      %s226 = scalar_select %p225, %s224, 63
      %p227 = scmp.lt.s32.totalorder %s22, 0
      %s228 = scalar_select %p227, %s22, 0
      %s229 = sadd.s32 %s228, %s226
      %s230 = smul.addr %s229, 4
      %s231 = scalar_lea.vmem %s1, %s230
      %p232 = pneg %p53
      %p233 = pneg %p50
      %p234 = pneg %p74
      %p235 = pneg %p71
      %p236 = pneg %p95
      %p237 = pneg %p92
      %s238 = smul.u32 8, %s23
      %p239 = scmp.lt.s32.totalorder %s238, 63
      %s240 = scalar_select %p239, %s238, 63
      %s241 = smul.addr %s240, 2
      %s242 = scalar_lea.vmem %s4, %s241
      %p243 = pneg %p121
      %p244 = pneg %p118
      %p245 = pneg %p142
      %p246 = pneg %p139
      %p247 = pneg %p168
      %p248 = pneg %p165
      %p249 = scmp.lt.s32.totalorder %s22, 0
      %s250 = scalar_select %p249, %s22, 0
      %s251 = smul.addr %s250, 8
      %s252 = scalar_lea.vmem %s6, %s251
      %s253 = smul.u32 8, %s23
      %p254 = scmp.lt.s32.totalorder %s253, 63
      %s255 = scalar_select %p254, %s253, 63
      %p256 = scmp.lt.s32.totalorder %s22, 0
      %s257 = scalar_select %p256, %s22, 0
      %s258 = sadd.s32 %s257, %s255
      %s259 = smul.addr %s258, 4
      %s260 = scalar_lea.vmem %s1, %s259
      %s261 = smul.u32 8, %s23
      %s262 = smul.u32 8, %s23
      %p263 = scmp.lt.s32.totalorder %s262, 63
      %s264 = scalar_select %p263, %s262, 63
      %s265 = smul.addr %s264, 2
      %s266 = scalar_lea.vmem %s4, %s265
      %s267 = smul.u32 8, %s23
      %p268 = scmp.lt.s32.totalorder %s22, 0
      %s269 = scalar_select %p268, %s22, 0
      %s270 = smul.addr %s269, 8
      %s271 = scalar_lea.vmem %s6, %s270
      %p273 = scmp.eq.s32.totalorder %s23, 0
      // Predicated region
      $region41: #{forward.1} parent=39 // pred_check
        %p274 = pneg %p273
      $region42: #{forward.1} parent=39 // pred_check_branch
        %276 = sbr.rel (%p274) target = $region44
      $region43: #{forward.1} parent=39 // pred_region
        %277 = vst [vmem:[#allocation2] sm:$0xff] 0.0
      $region44: #{forward.1} parent=39 // pred_fallthru
        _
      %v278 = vld [vmem:[%s2] sm:$0x3]
      %v279 = vld [vmem:[%s3] sm:$0x1]
      %v280 = vld [vmem:[%s260] sm:$0xf]
      %v282 = vlaneseq
      %v283 = vshrl.u32 %v282, 7
      %v284 = vsub.s32 0, %v283
      %v285 = vrot.slane %v279, %v284
      %vm287 = vcmask 31744
      %v289 = vsel %vm287, %v280, 0
      %vm291 = vcmask 1041408
      %v293 = vsel %vm291, %v278, 0
      %295 = vmatprep.subr.bf16.mxu0 0
      %296 = vmatpush1.bf16.msra.mxu0 %v293
      %297 = vmatprep.subr.bf16.mxu0 0
      %298 = vmatpush1.bf16.msra.mxu0 0
      %299 = vmatprep.subr.bf16.mxu0 0
      %300 = vmatpush1.bf16.msra.mxu0 0
      %301 = vmatprep.subr.bf16.mxu0 0
      %302 = vmatpush1.bf16.msra.mxu0 0
      %303 = vmatprep.subr.bf16.mxu0 0
      %304 = vmatpush1.bf16.msra.mxu0 0
      %305 = vmatprep.subr.bf16.mxu0 0
      %306 = vmatpush1.bf16.msra.mxu0 0
      %307 = vmatprep.subr.bf16.mxu0 0
      %308 = vmatpush1.bf16.msra.mxu0 0
      %309 = vmatprep.subr.bf16.mxu0 0
      %310 = vmatpush1.bf16.msra.mxu0 0
      %311 = vmatprep.subr.bf16.mxu0 0
      %312 = vmatpush1.bf16.msra.mxu0 0
      %313 = vmatprep.subr.bf16.mxu0 0
      %314 = vmatpush1.bf16.msra.mxu0 0
      %315 = vmatprep.subr.bf16.mxu0 0
      %316 = vmatpush1.bf16.msra.mxu0 0
      %317 = vmatprep.subr.bf16.mxu0 0
      %318 = vmatpush1.bf16.msra.mxu0 0
      %319 = vmatprep.subr.bf16.mxu0 0
      %320 = vmatpush1.bf16.msra.mxu0 0
      %321 = vmatprep.subr.bf16.mxu0 0
      %322 = vmatpush1.bf16.msra.mxu0 0
      %323 = vmatprep.subr.bf16.mxu0 0
      %324 = vmatpush1.bf16.msra.mxu0 0
      %325 = vmatprep.subr.bf16.mxu0 0
      %326 = vmatpush1.bf16.msra.mxu0 0
      %327 = vmatprep.mubr.bf16.mxu0 0
      %328 = vmatmul.mubr.bf16.gmra.mrb[0].mxu0 %v289
      %v329 = vpop.f32.mrb[0].mxu0
      %v330 = vadd.f32 %v285, %v329
      %v331 = vpop.f32.mrb[0].mxu0
      %v332 = vpop.f32.mrb[0].mxu0
      %v333 = vpop.f32.mrb[0].mxu0
      %334 = vdwg.mxu0
      %v335 = vpack.c.bf16 %v330, %v330
      %v336 = vld [vmem:[%s266] sm:$0x3]
      %s337 = scalar_lea.vmem %s260, 4
      %v338 = vld [vmem:[%s337] sm:$0xf]
      %v340 = vsel %vm287, %v338, 0
      %342 = vmatprep.subr.bf16.mxu0 0
      %343 = vmatpush1.bf16.msra.mxu0 %v293
      %344 = vmatprep.subr.bf16.mxu0 0
      %345 = vmatpush1.bf16.msra.mxu0 0
      %346 = vmatprep.subr.bf16.mxu0 0
      %347 = vmatpush1.bf16.msra.mxu0 0
      %348 = vmatprep.subr.bf16.mxu0 0
      %349 = vmatpush1.bf16.msra.mxu0 0
      %350 = vmatprep.subr.bf16.mxu0 0
      %351 = vmatpush1.bf16.msra.mxu0 0
      %352 = vmatprep.subr.bf16.mxu0 0
      %353 = vmatpush1.bf16.msra.mxu0 0
      %354 = vmatprep.subr.bf16.mxu0 0
      %355 = vmatpush1.bf16.msra.mxu0 0
      %356 = vmatprep.subr.bf16.mxu0 0
      %357 = vmatpush1.bf16.msra.mxu0 0
      %358 = vmatprep.subr.bf16.mxu0 0
      %359 = vmatpush1.bf16.msra.mxu0 0
      %360 = vmatprep.subr.bf16.mxu0 0
      %361 = vmatpush1.bf16.msra.mxu0 0
      %362 = vmatprep.subr.bf16.mxu0 0
      %363 = vmatpush1.bf16.msra.mxu0 0
      %364 = vmatprep.subr.bf16.mxu0 0
      %365 = vmatpush1.bf16.msra.mxu0 0
      %366 = vmatprep.subr.bf16.mxu0 0
      %367 = vmatpush1.bf16.msra.mxu0 0
      %368 = vmatprep.subr.bf16.mxu0 0
      %369 = vmatpush1.bf16.msra.mxu0 0
      %370 = vmatprep.subr.bf16.mxu0 0
      %371 = vmatpush1.bf16.msra.mxu0 0
      %372 = vmatprep.subr.bf16.mxu0 0
      %373 = vmatpush1.bf16.msra.mxu0 0
      %374 = vmatprep.mubr.bf16.mxu0 0
      %375 = vmatmul.mubr.bf16.gmra.mrb[0].mxu0 %v340
      %v376 = vpop.f32.mrb[0].mxu0
      %v377 = vadd.f32 %v285, %v376
      %v378 = vpop.f32.mrb[0].mxu0
      %v379 = vpop.f32.mrb[0].mxu0
      %v380 = vpop.f32.mrb[0].mxu0
      %381 = vdwg.mxu0
      %v382 = vpack.c.bf16 %v377, %v377
      %s383 = scalar_lea.vmem %s266, 2
      %v384 = vld [vmem:[%s383] sm:$0x3]
      %v386 = vsel %vm287, %v382, 0
      %v389 = vsel %vm291, %v384, 0
      %391 = vmatprep.subr.bf16.mxu0 0
      %392 = vmatpush1.bf16.msra.mxu0 %v389
      %393 = vmatprep.subr.bf16.mxu0 0
      %394 = vmatpush1.bf16.msra.mxu0 0
      %395 = vmatprep.subr.bf16.mxu0 0
      %396 = vmatpush1.bf16.msra.mxu0 0
      %397 = vmatprep.subr.bf16.mxu0 0
      %398 = vmatpush1.bf16.msra.mxu0 0
      %399 = vmatprep.subr.bf16.mxu0 0
      %400 = vmatpush1.bf16.msra.mxu0 0
      %401 = vmatprep.subr.bf16.mxu0 0
      %402 = vmatpush1.bf16.msra.mxu0 0
      %403 = vmatprep.subr.bf16.mxu0 0
      %404 = vmatpush1.bf16.msra.mxu0 0
      %405 = vmatprep.subr.bf16.mxu0 0
      %406 = vmatpush1.bf16.msra.mxu0 0
      %407 = vmatprep.subr.bf16.mxu0 0
      %408 = vmatpush1.bf16.msra.mxu0 0
      %409 = vmatprep.subr.bf16.mxu0 0
      %410 = vmatpush1.bf16.msra.mxu0 0
      %411 = vmatprep.subr.bf16.mxu0 0
      %412 = vmatpush1.bf16.msra.mxu0 0
      %413 = vmatprep.subr.bf16.mxu0 0
      %414 = vmatpush1.bf16.msra.mxu0 0
      %415 = vmatprep.subr.bf16.mxu0 0
      %416 = vmatpush1.bf16.msra.mxu0 0
      %417 = vmatprep.subr.bf16.mxu0 0
      %418 = vmatpush1.bf16.msra.mxu0 0
      %419 = vmatprep.subr.bf16.mxu0 0
      %420 = vmatpush1.bf16.msra.mxu0 0
      %421 = vmatprep.subr.bf16.mxu0 0
      %422 = vmatpush1.bf16.msra.mxu0 0
      %423 = vmatprep.mubr.bf16.mxu0 0
      %424 = vmatmul.mubr.bf16.gmra.mrb[0].mxu0 %v386
      %v425 = vpop.f32.mrb[0].mxu0
      %v426 = vadd.f32 0.0, %v425
      %v427 = vpop.f32.mrb[0].mxu0
      %v428 = vpop.f32.mrb[0].mxu0
      %v429 = vpop.f32.mrb[0].mxu0
      %430 = vdwg.mxu0
      %v432 = vsel %vm287, %v335, 0
      %v435 = vsel %vm291, %v336, 0
      %437 = vmatprep.subr.bf16.mxu0 0
      %438 = vmatpush1.bf16.msra.mxu0 %v435
      %439 = vmatprep.subr.bf16.mxu0 0
      %440 = vmatpush1.bf16.msra.mxu0 0
      %441 = vmatprep.subr.bf16.mxu0 0
      %442 = vmatpush1.bf16.msra.mxu0 0
      %443 = vmatprep.subr.bf16.mxu0 0
      %444 = vmatpush1.bf16.msra.mxu0 0
      %445 = vmatprep.subr.bf16.mxu0 0
      %446 = vmatpush1.bf16.msra.mxu0 0
      %447 = vmatprep.subr.bf16.mxu0 0
      %448 = vmatpush1.bf16.msra.mxu0 0
      %449 = vmatprep.subr.bf16.mxu0 0
      %450 = vmatpush1.bf16.msra.mxu0 0
      %451 = vmatprep.subr.bf16.mxu0 0
      %452 = vmatpush1.bf16.msra.mxu0 0
      %453 = vmatprep.subr.bf16.mxu0 0
      %454 = vmatpush1.bf16.msra.mxu0 0
      %455 = vmatprep.subr.bf16.mxu0 0
      %456 = vmatpush1.bf16.msra.mxu0 0
      %457 = vmatprep.subr.bf16.mxu0 0
      %458 = vmatpush1.bf16.msra.mxu0 0
      %459 = vmatprep.subr.bf16.mxu0 0
      %460 = vmatpush1.bf16.msra.mxu0 0
      %461 = vmatprep.subr.bf16.mxu0 0
      %462 = vmatpush1.bf16.msra.mxu0 0
      %463 = vmatprep.subr.bf16.mxu0 0
      %464 = vmatpush1.bf16.msra.mxu0 0
      %465 = vmatprep.subr.bf16.mxu0 0
      %466 = vmatpush1.bf16.msra.mxu0 0
      %467 = vmatprep.subr.bf16.mxu0 0
      %468 = vmatpush1.bf16.msra.mxu0 0
      %469 = vmatprep.mubr.bf16.mxu0 0
      %470 = vmatmul.mubr.bf16.gmra.mrb[0].mxu0 %v432
      %v471 = vpop.f32.mrb[0].mxu0
      %v472 = vadd.f32 %v426, %v471
      %v473 = vpop.f32.mrb[0].mxu0
      %v474 = vpop.f32.mrb[0].mxu0
      %v475 = vpop.f32.mrb[0].mxu0
      %476 = vdwg.mxu0
      %s477 = scalar_lea.vmem %s260, 8
      %v478 = vld [vmem:[%s477] sm:$0xf]
      %v480 = vsel %vm287, %v478, 0
      %482 = vmatprep.subr.bf16.mxu0 0
      %483 = vmatpush1.bf16.msra.mxu0 %v293
      %484 = vmatprep.subr.bf16.mxu0 0
      %485 = vmatpush1.bf16.msra.mxu0 0
      %486 = vmatprep.subr.bf16.mxu0 0
      %487 = vmatpush1.bf16.msra.mxu0 0
      %488 = vmatprep.subr.bf16.mxu0 0
      %489 = vmatpush1.bf16.msra.mxu0 0
      %490 = vmatprep.subr.bf16.mxu0 0
      %491 = vmatpush1.bf16.msra.mxu0 0
      %492 = vmatprep.subr.bf16.mxu0 0
      %493 = vmatpush1.bf16.msra.mxu0 0
      %494 = vmatprep.subr.bf16.mxu0 0
      %495 = vmatpush1.bf16.msra.mxu0 0
      %496 = vmatprep.subr.bf16.mxu0 0
      %497 = vmatpush1.bf16.msra.mxu0 0
      %498 = vmatprep.subr.bf16.mxu0 0
      %499 = vmatpush1.bf16.msra.mxu0 0
      %500 = vmatprep.subr.bf16.mxu0 0
      %501 = vmatpush1.bf16.msra.mxu0 0
      %502 = vmatprep.subr.bf16.mxu0 0
      %503 = vmatpush1.bf16.msra.mxu0 0
      %504 = vmatprep.subr.bf16.mxu0 0
      %505 = vmatpush1.bf16.msra.mxu0 0
      %506 = vmatprep.subr.bf16.mxu0 0
      %507 = vmatpush1.bf16.msra.mxu0 0
      %508 = vmatprep.subr.bf16.mxu0 0
      %509 = vmatpush1.bf16.msra.mxu0 0
      %510 = vmatprep.subr.bf16.mxu0 0
      %511 = vmatpush1.bf16.msra.mxu0 0
      %512 = vmatprep.subr.bf16.mxu0 0
      %513 = vmatpush1.bf16.msra.mxu0 0
      %514 = vmatprep.mubr.bf16.mxu0 0
      %515 = vmatmul.mubr.bf16.gmra.mrb[0].mxu0 %v480
      %v516 = vpop.f32.mrb[0].mxu0
      %v517 = vadd.f32 %v285, %v516
      %v518 = vpop.f32.mrb[0].mxu0
      %v519 = vpop.f32.mrb[0].mxu0
      %v520 = vpop.f32.mrb[0].mxu0
      %521 = vdwg.mxu0
      %v522 = vpack.c.bf16 %v517, %v517
      %s523 = scalar_lea.vmem %s266, 4
      %v524 = vld [vmem:[%s523] sm:$0x3]
      %v526 = vsel %vm287, %v522, 0
      %v529 = vsel %vm291, %v524, 0
      %531 = vmatprep.subr.bf16.mxu0 0
      %532 = vmatpush1.bf16.msra.mxu0 %v529
      %533 = vmatprep.subr.bf16.mxu0 0
      %534 = vmatpush1.bf16.msra.mxu0 0
      %535 = vmatprep.subr.bf16.mxu0 0
      %536 = vmatpush1.bf16.msra.mxu0 0
      %537 = vmatprep.subr.bf16.mxu0 0
      %538 = vmatpush1.bf16.msra.mxu0 0
      %539 = vmatprep.subr.bf16.mxu0 0
      %540 = vmatpush1.bf16.msra.mxu0 0
      %541 = vmatprep.subr.bf16.mxu0 0
      %542 = vmatpush1.bf16.msra.mxu0 0
      %543 = vmatprep.subr.bf16.mxu0 0
      %544 = vmatpush1.bf16.msra.mxu0 0
      %545 = vmatprep.subr.bf16.mxu0 0
      %546 = vmatpush1.bf16.msra.mxu0 0
      %547 = vmatprep.subr.bf16.mxu0 0
      %548 = vmatpush1.bf16.msra.mxu0 0
      %549 = vmatprep.subr.bf16.mxu0 0
      %550 = vmatpush1.bf16.msra.mxu0 0
      %551 = vmatprep.subr.bf16.mxu0 0
      %552 = vmatpush1.bf16.msra.mxu0 0
      %553 = vmatprep.subr.bf16.mxu0 0
      %554 = vmatpush1.bf16.msra.mxu0 0
      %555 = vmatprep.subr.bf16.mxu0 0
      %556 = vmatpush1.bf16.msra.mxu0 0
      %557 = vmatprep.subr.bf16.mxu0 0
      %558 = vmatpush1.bf16.msra.mxu0 0
      %559 = vmatprep.subr.bf16.mxu0 0
      %560 = vmatpush1.bf16.msra.mxu0 0
      %561 = vmatprep.subr.bf16.mxu0 0
      %562 = vmatpush1.bf16.msra.mxu0 0
      %563 = vmatprep.mubr.bf16.mxu0 0
      %564 = vmatmul.mubr.bf16.gmra.mrb[0].mxu0 %v526
      %v565 = vpop.f32.mrb[0].mxu0
      %v566 = vadd.f32 0.0, %v565
      %v567 = vpop.f32.mrb[0].mxu0
      %v568 = vpop.f32.mrb[0].mxu0
      %v569 = vpop.f32.mrb[0].mxu0
      %570 = vdwg.mxu0
      %v571 = vadd.f32 %v472, %v566
      %s572 = scalar_lea.vmem %s260, 12
      %v573 = vld [vmem:[%s572] sm:$0xf]
      %v575 = vsel %vm287, %v573, 0
      %577 = vmatprep.subr.bf16.mxu0 0
      %578 = vmatpush1.bf16.msra.mxu0 %v293
      %579 = vmatprep.subr.bf16.mxu0 0
      %580 = vmatpush1.bf16.msra.mxu0 0
      %581 = vmatprep.subr.bf16.mxu0 0
      %582 = vmatpush1.bf16.msra.mxu0 0
      %583 = vmatprep.subr.bf16.mxu0 0
      %584 = vmatpush1.bf16.msra.mxu0 0
      %585 = vmatprep.subr.bf16.mxu0 0
      %586 = vmatpush1.bf16.msra.mxu0 0
      %587 = vmatprep.subr.bf16.mxu0 0
      %588 = vmatpush1.bf16.msra.mxu0 0
      %589 = vmatprep.subr.bf16.mxu0 0
      %590 = vmatpush1.bf16.msra.mxu0 0
      %591 = vmatprep.subr.bf16.mxu0 0
      %592 = vmatpush1.bf16.msra.mxu0 0
      %593 = vmatprep.subr.bf16.mxu0 0
      %594 = vmatpush1.bf16.msra.mxu0 0
      %595 = vmatprep.subr.bf16.mxu0 0
      %596 = vmatpush1.bf16.msra.mxu0 0
      %597 = vmatprep.subr.bf16.mxu0 0
      %598 = vmatpush1.bf16.msra.mxu0 0
      %599 = vmatprep.subr.bf16.mxu0 0
      %600 = vmatpush1.bf16.msra.mxu0 0
      %601 = vmatprep.subr.bf16.mxu0 0
      %602 = vmatpush1.bf16.msra.mxu0 0
      %603 = vmatprep.subr.bf16.mxu0 0
      %604 = vmatpush1.bf16.msra.mxu0 0
      %605 = vmatprep.subr.bf16.mxu0 0
      %606 = vmatpush1.bf16.msra.mxu0 0
      %607 = vmatprep.subr.bf16.mxu0 0
      %608 = vmatpush1.bf16.msra.mxu0 0
      %609 = vmatprep.mubr.bf16.mxu0 0
      %610 = vmatmul.mubr.bf16.gmra.mrb[0].mxu0 %v575
      %v611 = vpop.f32.mrb[0].mxu0
      %v612 = vadd.f32 %v285, %v611
      %v613 = vpop.f32.mrb[0].mxu0
      %v614 = vpop.f32.mrb[0].mxu0
      %v615 = vpop.f32.mrb[0].mxu0
      %616 = vdwg.mxu0
      %v617 = vpack.c.bf16 %v612, %v612
      %s618 = scalar_lea.vmem %s266, 6
      %v619 = vld [vmem:[%s618] sm:$0x3]
      %v621 = vsel %vm287, %v617, 0
      %v624 = vsel %vm291, %v619, 0
      %626 = vmatprep.subr.bf16.mxu0 0
      %627 = vmatpush1.bf16.msra.mxu0 %v624
      %628 = vmatprep.subr.bf16.mxu0 0
      %629 = vmatpush1.bf16.msra.mxu0 0
      %630 = vmatprep.subr.bf16.mxu0 0
      %631 = vmatpush1.bf16.msra.mxu0 0
      %632 = vmatprep.subr.bf16.mxu0 0
      %633 = vmatpush1.bf16.msra.mxu0 0
      %634 = vmatprep.subr.bf16.mxu0 0
      %635 = vmatpush1.bf16.msra.mxu0 0
      %636 = vmatprep.subr.bf16.mxu0 0
      %637 = vmatpush1.bf16.msra.mxu0 0
      %638 = vmatprep.subr.bf16.mxu0 0
      %639 = vmatpush1.bf16.msra.mxu0 0
      %640 = vmatprep.subr.bf16.mxu0 0
      %641 = vmatpush1.bf16.msra.mxu0 0
      %642 = vmatprep.subr.bf16.mxu0 0
      %643 = vmatpush1.bf16.msra.mxu0 0
      %644 = vmatprep.subr.bf16.mxu0 0
      %645 = vmatpush1.bf16.msra.mxu0 0
      %646 = vmatprep.subr.bf16.mxu0 0
      %647 = vmatpush1.bf16.msra.mxu0 0
      %648 = vmatprep.subr.bf16.mxu0 0
      %649 = vmatpush1.bf16.msra.mxu0 0
      %650 = vmatprep.subr.bf16.mxu0 0
      %651 = vmatpush1.bf16.msra.mxu0 0
      %652 = vmatprep.subr.bf16.mxu0 0
      %653 = vmatpush1.bf16.msra.mxu0 0
      %654 = vmatprep.subr.bf16.mxu0 0
      %655 = vmatpush1.bf16.msra.mxu0 0
      %656 = vmatprep.subr.bf16.mxu0 0
      %657 = vmatpush1.bf16.msra.mxu0 0
      %658 = vmatprep.mubr.bf16.mxu0 0
      %659 = vmatmul.mubr.bf16.gmra.mrb[0].mxu0 %v621
      %v660 = vpop.f32.mrb[0].mxu0
      %v661 = vadd.f32 0.0, %v660
      %v662 = vpop.f32.mrb[0].mxu0
      %v663 = vpop.f32.mrb[0].mxu0
      %v664 = vpop.f32.mrb[0].mxu0
      %665 = vdwg.mxu0
      %v666 = vadd.f32 %v571, %v661
      %s667 = scalar_lea.vmem %s260, 16
      %v668 = vld [vmem:[%s667] sm:$0xf]
      %v670 = vsel %vm287, %v668, 0
      %672 = vmatprep.subr.bf16.mxu0 0
      %673 = vmatpush1.bf16.msra.mxu0 %v293
      %674 = vmatprep.subr.bf16.mxu0 0
      %675 = vmatpush1.bf16.msra.mxu0 0
      %676 = vmatprep.subr.bf16.mxu0 0
      %677 = vmatpush1.bf16.msra.mxu0 0
      %678 = vmatprep.subr.bf16.mxu0 0
      %679 = vmatpush1.bf16.msra.mxu0 0
      %680 = vmatprep.subr.bf16.mxu0 0
      %681 = vmatpush1.bf16.msra.mxu0 0
      %682 = vmatprep.subr.bf16.mxu0 0
      %683 = vmatpush1.bf16.msra.mxu0 0
      %684 = vmatprep.subr.bf16.mxu0 0
      %685 = vmatpush1.bf16.msra.mxu0 0
      %686 = vmatprep.subr.bf16.mxu0 0
      %687 = vmatpush1.bf16.msra.mxu0 0
      %688 = vmatprep.subr.bf16.mxu0 0
      %689 = vmatpush1.bf16.msra.mxu0 0
      %690 = vmatprep.subr.bf16.mxu0 0
      %691 = vmatpush1.bf16.msra.mxu0 0
      %692 = vmatprep.subr.bf16.mxu0 0
      %693 = vmatpush1.bf16.msra.mxu0 0
      %694 = vmatprep.subr.bf16.mxu0 0
      %695 = vmatpush1.bf16.msra.mxu0 0
      %696 = vmatprep.subr.bf16.mxu0 0
      %697 = vmatpush1.bf16.msra.mxu0 0
      %698 = vmatprep.subr.bf16.mxu0 0
      %699 = vmatpush1.bf16.msra.mxu0 0
      %700 = vmatprep.subr.bf16.mxu0 0
      %701 = vmatpush1.bf16.msra.mxu0 0
      %702 = vmatprep.subr.bf16.mxu0 0
      %703 = vmatpush1.bf16.msra.mxu0 0
      %704 = vmatprep.mubr.bf16.mxu0 0
      %705 = vmatmul.mubr.bf16.gmra.mrb[0].mxu0 %v670
      %v706 = vpop.f32.mrb[0].mxu0
      %v707 = vadd.f32 %v285, %v706
      %v708 = vpop.f32.mrb[0].mxu0
      %v709 = vpop.f32.mrb[0].mxu0
      %v710 = vpop.f32.mrb[0].mxu0
      %711 = vdwg.mxu0
      %v712 = vpack.c.bf16 %v707, %v707
      %s713 = scalar_lea.vmem %s266, 8
      %v714 = vld [vmem:[%s713] sm:$0x3]
      %v716 = vsel %vm287, %v712, 0
      %v719 = vsel %vm291, %v714, 0
      %721 = vmatprep.subr.bf16.mxu0 0
      %722 = vmatpush1.bf16.msra.mxu0 %v719
      %723 = vmatprep.subr.bf16.mxu0 0
      %724 = vmatpush1.bf16.msra.mxu0 0
      %725 = vmatprep.subr.bf16.mxu0 0
      %726 = vmatpush1.bf16.msra.mxu0 0
      %727 = vmatprep.subr.bf16.mxu0 0
      %728 = vmatpush1.bf16.msra.mxu0 0
      %729 = vmatprep.subr.bf16.mxu0 0
      %730 = vmatpush1.bf16.msra.mxu0 0
      %731 = vmatprep.subr.bf16.mxu0 0
      %732 = vmatpush1.bf16.msra.mxu0 0
      %733 = vmatprep.subr.bf16.mxu0 0
      %734 = vmatpush1.bf16.msra.mxu0 0
      %735 = vmatprep.subr.bf16.mxu0 0
      %736 = vmatpush1.bf16.msra.mxu0 0
      %737 = vmatprep.subr.bf16.mxu0 0
      %738 = vmatpush1.bf16.msra.mxu0 0
      %739 = vmatprep.subr.bf16.mxu0 0
      %740 = vmatpush1.bf16.msra.mxu0 0
      %741 = vmatprep.subr.bf16.mxu0 0
      %742 = vmatpush1.bf16.msra.mxu0 0
      %743 = vmatprep.subr.bf16.mxu0 0
      %744 = vmatpush1.bf16.msra.mxu0 0
      %745 = vmatprep.subr.bf16.mxu0 0
      %746 = vmatpush1.bf16.msra.mxu0 0
      %747 = vmatprep.subr.bf16.mxu0 0
      %748 = vmatpush1.bf16.msra.mxu0 0
      %749 = vmatprep.subr.bf16.mxu0 0
      %750 = vmatpush1.bf16.msra.mxu0 0
      %751 = vmatprep.subr.bf16.mxu0 0
      %752 = vmatpush1.bf16.msra.mxu0 0
      %753 = vmatprep.mubr.bf16.mxu0 0
      %754 = vmatmul.mubr.bf16.gmra.mrb[0].mxu0 %v716
      %v755 = vpop.f32.mrb[0].mxu0
      %v756 = vadd.f32 0.0, %v755
      %v757 = vpop.f32.mrb[0].mxu0
      %v758 = vpop.f32.mrb[0].mxu0
      %v759 = vpop.f32.mrb[0].mxu0
      %760 = vdwg.mxu0
      %v761 = vadd.f32 %v666, %v756
      %s762 = scalar_lea.vmem %s260, 20
      %v763 = vld [vmem:[%s762] sm:$0xf]
      %v765 = vsel %vm287, %v763, 0
      %767 = vmatprep.subr.bf16.mxu0 0
      %768 = vmatpush1.bf16.msra.mxu0 %v293
      %769 = vmatprep.subr.bf16.mxu0 0
      %770 = vmatpush1.bf16.msra.mxu0 0
      %771 = vmatprep.subr.bf16.mxu0 0
      %772 = vmatpush1.bf16.msra.mxu0 0
      %773 = vmatprep.subr.bf16.mxu0 0
      %774 = vmatpush1.bf16.msra.mxu0 0
      %775 = vmatprep.subr.bf16.mxu0 0
      %776 = vmatpush1.bf16.msra.mxu0 0
      %777 = vmatprep.subr.bf16.mxu0 0
      %778 = vmatpush1.bf16.msra.mxu0 0
      %779 = vmatprep.subr.bf16.mxu0 0
      %780 = vmatpush1.bf16.msra.mxu0 0
      %781 = vmatprep.subr.bf16.mxu0 0
      %782 = vmatpush1.bf16.msra.mxu0 0
      %783 = vmatprep.subr.bf16.mxu0 0
      %784 = vmatpush1.bf16.msra.mxu0 0
      %785 = vmatprep.subr.bf16.mxu0 0
      %786 = vmatpush1.bf16.msra.mxu0 0
      %787 = vmatprep.subr.bf16.mxu0 0
      %788 = vmatpush1.bf16.msra.mxu0 0
      %789 = vmatprep.subr.bf16.mxu0 0
      %790 = vmatpush1.bf16.msra.mxu0 0
      %791 = vmatprep.subr.bf16.mxu0 0
      %792 = vmatpush1.bf16.msra.mxu0 0
      %793 = vmatprep.subr.bf16.mxu0 0
      %794 = vmatpush1.bf16.msra.mxu0 0
      %795 = vmatprep.subr.bf16.mxu0 0
      %796 = vmatpush1.bf16.msra.mxu0 0
      %797 = vmatprep.subr.bf16.mxu0 0
      %798 = vmatpush1.bf16.msra.mxu0 0
      %799 = vmatprep.mubr.bf16.mxu0 0
      %800 = vmatmul.mubr.bf16.gmra.mrb[0].mxu0 %v765
      %v801 = vpop.f32.mrb[0].mxu0
      %v802 = vadd.f32 %v285, %v801
      %v803 = vpop.f32.mrb[0].mxu0
      %v804 = vpop.f32.mrb[0].mxu0
      %v805 = vpop.f32.mrb[0].mxu0
      %806 = vdwg.mxu0
      %v807 = vpack.c.bf16 %v802, %v802
      %s808 = scalar_lea.vmem %s266, 10
      %v809 = vld [vmem:[%s808] sm:$0x3]
      %v811 = vsel %vm287, %v807, 0
      %v814 = vsel %vm291, %v809, 0
      %816 = vmatprep.subr.bf16.mxu0 0
      %817 = vmatpush1.bf16.msra.mxu0 %v814
      %818 = vmatprep.subr.bf16.mxu0 0
      %819 = vmatpush1.bf16.msra.mxu0 0
      %820 = vmatprep.subr.bf16.mxu0 0
      %821 = vmatpush1.bf16.msra.mxu0 0
      %822 = vmatprep.subr.bf16.mxu0 0
      %823 = vmatpush1.bf16.msra.mxu0 0
      %824 = vmatprep.subr.bf16.mxu0 0
      %825 = vmatpush1.bf16.msra.mxu0 0
      %826 = vmatprep.subr.bf16.mxu0 0
      %827 = vmatpush1.bf16.msra.mxu0 0
      %828 = vmatprep.subr.bf16.mxu0 0
      %829 = vmatpush1.bf16.msra.mxu0 0
      %830 = vmatprep.subr.bf16.mxu0 0
      %831 = vmatpush1.bf16.msra.mxu0 0
      %832 = vmatprep.subr.bf16.mxu0 0
      %833 = vmatpush1.bf16.msra.mxu0 0
      %834 = vmatprep.subr.bf16.mxu0 0
      %835 = vmatpush1.bf16.msra.mxu0 0
      %836 = vmatprep.subr.bf16.mxu0 0
      %837 = vmatpush1.bf16.msra.mxu0 0
      %838 = vmatprep.subr.bf16.mxu0 0
      %839 = vmatpush1.bf16.msra.mxu0 0
      %840 = vmatprep.subr.bf16.mxu0 0
      %841 = vmatpush1.bf16.msra.mxu0 0
      %842 = vmatprep.subr.bf16.mxu0 0
      %843 = vmatpush1.bf16.msra.mxu0 0
      %844 = vmatprep.subr.bf16.mxu0 0
      %845 = vmatpush1.bf16.msra.mxu0 0
      %846 = vmatprep.subr.bf16.mxu0 0
      %847 = vmatpush1.bf16.msra.mxu0 0
      %848 = vmatprep.mubr.bf16.mxu0 0
      %849 = vmatmul.mubr.bf16.gmra.mrb[0].mxu0 %v811
      %v850 = vpop.f32.mrb[0].mxu0
      %v851 = vadd.f32 0.0, %v850
      %v852 = vpop.f32.mrb[0].mxu0
      %v853 = vpop.f32.mrb[0].mxu0
      %v854 = vpop.f32.mrb[0].mxu0
      %855 = vdwg.mxu0
      %v856 = vadd.f32 %v761, %v851
      %s857 = scalar_lea.vmem %s260, 24
      %v858 = vld [vmem:[%s857] sm:$0xf]
      %v860 = vsel %vm287, %v858, 0
      %862 = vmatprep.subr.bf16.mxu0 0
      %863 = vmatpush1.bf16.msra.mxu0 %v293
      %864 = vmatprep.subr.bf16.mxu0 0
      %865 = vmatpush1.bf16.msra.mxu0 0
      %866 = vmatprep.subr.bf16.mxu0 0
      %867 = vmatpush1.bf16.msra.mxu0 0
      %868 = vmatprep.subr.bf16.mxu0 0
      %869 = vmatpush1.bf16.msra.mxu0 0
      %870 = vmatprep.subr.bf16.mxu0 0
      %871 = vmatpush1.bf16.msra.mxu0 0
      %872 = vmatprep.subr.bf16.mxu0 0
      %873 = vmatpush1.bf16.msra.mxu0 0
      %874 = vmatprep.subr.bf16.mxu0 0
      %875 = vmatpush1.bf16.msra.mxu0 0
      %876 = vmatprep.subr.bf16.mxu0 0
      %877 = vmatpush1.bf16.msra.mxu0 0
      %878 = vmatprep.subr.bf16.mxu0 0
      %879 = vmatpush1.bf16.msra.mxu0 0
      %880 = vmatprep.subr.bf16.mxu0 0
      %881 = vmatpush1.bf16.msra.mxu0 0
      %882 = vmatprep.subr.bf16.mxu0 0
      %883 = vmatpush1.bf16.msra.mxu0 0
      %884 = vmatprep.subr.bf16.mxu0 0
      %885 = vmatpush1.bf16.msra.mxu0 0
      %886 = vmatprep.subr.bf16.mxu0 0
      %887 = vmatpush1.bf16.msra.mxu0 0
      %888 = vmatprep.subr.bf16.mxu0 0
      %889 = vmatpush1.bf16.msra.mxu0 0
      %890 = vmatprep.subr.bf16.mxu0 0
      %891 = vmatpush1.bf16.msra.mxu0 0
      %892 = vmatprep.subr.bf16.mxu0 0
      %893 = vmatpush1.bf16.msra.mxu0 0
      %894 = vmatprep.mubr.bf16.mxu0 0
      %895 = vmatmul.mubr.bf16.gmra.mrb[0].mxu0 %v860
      %v896 = vpop.f32.mrb[0].mxu0
      %v897 = vadd.f32 %v285, %v896
      %v898 = vpop.f32.mrb[0].mxu0
      %v899 = vpop.f32.mrb[0].mxu0
      %v900 = vpop.f32.mrb[0].mxu0
      %901 = vdwg.mxu0
      %v902 = vpack.c.bf16 %v897, %v897
      %s903 = scalar_lea.vmem %s266, 12
      %v904 = vld [vmem:[%s903] sm:$0x3]
      %v906 = vsel %vm287, %v902, 0
      %v909 = vsel %vm291, %v904, 0
      %911 = vmatprep.subr.bf16.mxu0 0
      %912 = vmatpush1.bf16.msra.mxu0 %v909
      %913 = vmatprep.subr.bf16.mxu0 0
      %914 = vmatpush1.bf16.msra.mxu0 0
      %915 = vmatprep.subr.bf16.mxu0 0
      %916 = vmatpush1.bf16.msra.mxu0 0
      %917 = vmatprep.subr.bf16.mxu0 0
      %918 = vmatpush1.bf16.msra.mxu0 0
      %919 = vmatprep.subr.bf16.mxu0 0
      %920 = vmatpush1.bf16.msra.mxu0 0
      %921 = vmatprep.subr.bf16.mxu0 0
      %922 = vmatpush1.bf16.msra.mxu0 0
      %923 = vmatprep.subr.bf16.mxu0 0
      %924 = vmatpush1.bf16.msra.mxu0 0
      %925 = vmatprep.subr.bf16.mxu0 0
      %926 = vmatpush1.bf16.msra.mxu0 0
      %927 = vmatprep.subr.bf16.mxu0 0
      %928 = vmatpush1.bf16.msra.mxu0 0
      %929 = vmatprep.subr.bf16.mxu0 0
      %930 = vmatpush1.bf16.msra.mxu0 0
      %931 = vmatprep.subr.bf16.mxu0 0
      %932 = vmatpush1.bf16.msra.mxu0 0
      %933 = vmatprep.subr.bf16.mxu0 0
      %934 = vmatpush1.bf16.msra.mxu0 0
      %935 = vmatprep.subr.bf16.mxu0 0
      %936 = vmatpush1.bf16.msra.mxu0 0
      %937 = vmatprep.subr.bf16.mxu0 0
      %938 = vmatpush1.bf16.msra.mxu0 0
      %939 = vmatprep.subr.bf16.mxu0 0
      %940 = vmatpush1.bf16.msra.mxu0 0
      %941 = vmatprep.subr.bf16.mxu0 0
      %942 = vmatpush1.bf16.msra.mxu0 0
      %943 = vmatprep.mubr.bf16.mxu0 0
      %944 = vmatmul.mubr.bf16.gmra.mrb[0].mxu0 %v906
      %v945 = vpop.f32.mrb[0].mxu0
      %v946 = vadd.f32 0.0, %v945
      %v947 = vpop.f32.mrb[0].mxu0
      %v948 = vpop.f32.mrb[0].mxu0
      %v949 = vpop.f32.mrb[0].mxu0
      %950 = vdwg.mxu0
      %v951 = vadd.f32 %v856, %v946
      %s952 = scalar_lea.vmem %s260, 28
      %v953 = vld [vmem:[%s952] sm:$0xf]
      %v955 = vsel %vm287, %v953, 0
      %957 = vmatprep.subr.bf16.mxu0 0
      %958 = vmatpush1.bf16.msra.mxu0 %v293
      %959 = vmatprep.subr.bf16.mxu0 0
      %960 = vmatpush1.bf16.msra.mxu0 0
      %961 = vmatprep.subr.bf16.mxu0 0
      %962 = vmatpush1.bf16.msra.mxu0 0
      %963 = vmatprep.subr.bf16.mxu0 0
      %964 = vmatpush1.bf16.msra.mxu0 0
      %965 = vmatprep.subr.bf16.mxu0 0
      %966 = vmatpush1.bf16.msra.mxu0 0
      %967 = vmatprep.subr.bf16.mxu0 0
      %968 = vmatpush1.bf16.msra.mxu0 0
      %969 = vmatprep.subr.bf16.mxu0 0
      %970 = vmatpush1.bf16.msra.mxu0 0
      %971 = vmatprep.subr.bf16.mxu0 0
      %972 = vmatpush1.bf16.msra.mxu0 0
      %973 = vmatprep.subr.bf16.mxu0 0
      %974 = vmatpush1.bf16.msra.mxu0 0
      %975 = vmatprep.subr.bf16.mxu0 0
      %976 = vmatpush1.bf16.msra.mxu0 0
      %977 = vmatprep.subr.bf16.mxu0 0
      %978 = vmatpush1.bf16.msra.mxu0 0
      %979 = vmatprep.subr.bf16.mxu0 0
      %980 = vmatpush1.bf16.msra.mxu0 0
      %981 = vmatprep.subr.bf16.mxu0 0
      %982 = vmatpush1.bf16.msra.mxu0 0
      %983 = vmatprep.subr.bf16.mxu0 0
      %984 = vmatpush1.bf16.msra.mxu0 0
      %985 = vmatprep.subr.bf16.mxu0 0
      %986 = vmatpush1.bf16.msra.mxu0 0
      %987 = vmatprep.subr.bf16.mxu0 0
      %988 = vmatpush1.bf16.msra.mxu0 0
      %989 = vmatprep.mubr.bf16.mxu0 0
      %990 = vmatmul.mubr.bf16.gmra.mrb[0].mxu0 %v955
      %v991 = vpop.f32.mrb[0].mxu0
      %v992 = vadd.f32 %v285, %v991
      %v993 = vpop.f32.mrb[0].mxu0
      %v994 = vpop.f32.mrb[0].mxu0
      %v995 = vpop.f32.mrb[0].mxu0
      %996 = vdwg.mxu0
      %v997 = vpack.c.bf16 %v992, %v992
      %s998 = scalar_lea.vmem %s266, 14
      %v999 = vld [vmem:[%s998] sm:$0x3]
      %v1001 = vsel %vm287, %v997, 0
      %v1004 = vsel %vm291, %v999, 0
      %1006 = vmatprep.subr.bf16.mxu0 0
      %1007 = vmatpush1.bf16.msra.mxu0 %v1004
      %1008 = vmatprep.subr.bf16.mxu0 0
      %1009 = vmatpush1.bf16.msra.mxu0 0
      %1010 = vmatprep.subr.bf16.mxu0 0
      %1011 = vmatpush1.bf16.msra.mxu0 0
      %1012 = vmatprep.subr.bf16.mxu0 0
      %1013 = vmatpush1.bf16.msra.mxu0 0
      %1014 = vmatprep.subr.bf16.mxu0 0
      %1015 = vmatpush1.bf16.msra.mxu0 0
      %1016 = vmatprep.subr.bf16.mxu0 0
      %1017 = vmatpush1.bf16.msra.mxu0 0
      %1018 = vmatprep.subr.bf16.mxu0 0
      %1019 = vmatpush1.bf16.msra.mxu0 0
      %1020 = vmatprep.subr.bf16.mxu0 0
      %1021 = vmatpush1.bf16.msra.mxu0 0
      %1022 = vmatprep.subr.bf16.mxu0 0
      %1023 = vmatpush1.bf16.msra.mxu0 0
      %1024 = vmatprep.subr.bf16.mxu0 0
      %1025 = vmatpush1.bf16.msra.mxu0 0
      %1026 = vmatprep.subr.bf16.mxu0 0
      %1027 = vmatpush1.bf16.msra.mxu0 0
      %1028 = vmatprep.subr.bf16.mxu0 0
      %1029 = vmatpush1.bf16.msra.mxu0 0
      %1030 = vmatprep.subr.bf16.mxu0 0
      %1031 = vmatpush1.bf16.msra.mxu0 0
      %1032 = vmatprep.subr.bf16.mxu0 0
      %1033 = vmatpush1.bf16.msra.mxu0 0
      %1034 = vmatprep.subr.bf16.mxu0 0
      %1035 = vmatpush1.bf16.msra.mxu0 0
      %1036 = vmatprep.subr.bf16.mxu0 0
      %1037 = vmatpush1.bf16.msra.mxu0 0
      %1038 = vmatprep.mubr.bf16.mxu0 0
      %1039 = vmatmul.mubr.bf16.gmra.mrb[0].mxu0 %v1001
      %v1040 = vpop.f32.mrb[0].mxu0
      %v1041 = vadd.f32 0.0, %v1040
      %v1042 = vpop.f32.mrb[0].mxu0
      %v1043 = vpop.f32.mrb[0].mxu0
      %v1044 = vpop.f32.mrb[0].mxu0
      %1045 = vdwg.mxu0
      %v1046 = vadd.f32 %v951, %v1041
      %v1047 = vld [vmem:[#allocation2] sm:$0xff]
      %v1048 = vadd.f32 %v1047, %v1046
      %1049 = vst [vmem:[#allocation2] sm:$0xff] %v1048
      %p1050 = scmp.eq.s32.totalorder %s23, 7
      // Predicated region
      $region45: #{forward.1} parent=39 // pred_check
        %p1051 = pneg %p1050
      $region46: #{forward.1} parent=39 // pred_check_branch
        %1053 = sbr.rel (%p1051) target = $region48
      $region47: #{forward.1} parent=39 // pred_region
        %v1054 = vld [vmem:[#allocation2] sm:$0xff]
        %v1055 = vld [vmem:[%s5] sm:$0x1]
        %v1057 = vlaneseq
        %v1058 = vshrl.u32 %v1057, 7
        %v1059 = vsub.s32 0, %v1058
        %v1060 = vrot.slane %v1055, %v1059
        %v1062 = vadd.f32 %v1054, %v1060
        %v1063 = vmax.f32 %v1062, 0.0
        %1064 = vst [vmem:[%s271] sm:$0xff] %v1063
      $region48: #{forward.1} parent=39 // pred_fallthru
        _
      %p1065 = scmp.lt.s32.totalorder %s22, 0
      %s1066 = scalar_select %p1065, %s22, 0
      %s1067 = smul.addr %s1066, 8
      %s1068 = scalar_lea.vmem %s6, %s1067
      // Predicated region
      $region49: #{forward.1} parent=39 // pred_check
        %p1069 = pneg %p165
      $region50: #{forward.1} parent=39 // pred_check_branch
        %1071 = sbr.rel (%p1069) target = $region52
      $region51: #{forward.1} parent=39 // pred_region
        _
      $region52: #{forward.1} parent=39 // pred_fallthru
        _
      // Predicated region
      $region53: #{forward.1} parent=39 // pred_check
        %p1072 = pneg %p165
      $region54: #{forward.1} parent=39 // pred_check_branch
        %1074 = sbr.rel (%p1072) target = $region56
      $region55: #{forward.1} parent=39 // pred_region
        %p1075 = scmp.lt.s32.totalorder %s22, 0
        %s1076 = scalar_select %p1075, %s22, 0
        %s1077 = smul.addr %s1076, 8
        %s1078 = scalar_lea.vmem %s6, %s1077
      $region56: #{forward.1} parent=39 // pred_fallthru
        _
    $region40: #{forward.1} parent=5 // pred_fallthru
      _
    %p1079 = scmp.le.s32.totalorder 2, %s13
    // Predicated region
    $region57: #{forward.1} parent=5 // pred_check
      %p1080 = pneg %p1079
    $region58: #{forward.1} parent=5 // pred_check_branch
      %1082 = sbr.rel (%p1080) target = $region60
    $region59: #{forward.1} parent=5 // pred_region
      %s1083 = ssub.s32 %s13, 2
    $region60: #{forward.1} parent=5 // pred_fallthru
      _
  $region6: #{forward.1} parent=0 // loop_footer
    %s17 = sadd.s32 1, %s13
  $region7: #{forward.1} parent=0 // loop_footer_branch
    %12 = sbr.rel target = $region3
  $region8: #{forward.1} parent=0 // loop_exit
    _

</llo_original>
